<compile_context>
chip_gen: v7x
topology: tpu7x:2x2x1
jax: 0.10.0
libtpu: 0.0.40
codegen_flags: <defaults>
</compile_context>

<pallas_src>
import functools
import math

import jax
import jax.numpy as jnp
from jax.experimental import pallas as pl
from jax.experimental.pallas import tpu as pltpu


def _round_up(x, m):
    return ((x + m - 1) // m) * m


def _lora_matmul_kernel(b_ref, a_ref, o_ref, *, compute_dtype):
    # b_ref: (d1r, r)   a_ref: (r, tn)   o_ref: (d1r, tn)
    b = b_ref[...]
    a = a_ref[...]
    # Cast to bf16 for a single MXU pass (f32 inputs would take multiple passes);
    # accumulation is kept in f32 via preferred_element_type.
    if b.dtype != compute_dtype:
        b = b.astype(compute_dtype)
    if a.dtype != compute_dtype:
        a = a.astype(compute_dtype)
    acc = jnp.dot(b, a, preferred_element_type=jnp.float32)
    o_ref[...] = acc.astype(o_ref.dtype)


def _pick_tn(d1r, r, d2r, in_itemsize, out_itemsize, *, cap=2048,
             vmem_budget_bytes=8 * 1024 * 1024):
    """Pick the lane tile width.

    Largest multiple of 128 such that the double-buffered A-tile + out-tile stay
    under `vmem_budget_bytes` (safe vs. every generation's default scoped VMEM),
    capped at `cap`.  Small arrays get a single full-width tile; large arrays are
    split into >= 2 grid steps so v7x's two TensorCores both get work.
    """
    per_lane_bytes = 2 * (r * in_itemsize + d1r * out_itemsize)  # 2x = double buffer
    tn = max(128, (vmem_budget_bytes // max(per_lane_bytes, 1)) // 128 * 128)
    tn = min(tn, cap)
    if tn >= d2r:
        if d2r >= 1024:
            # Keep at least 2 grid steps for megacore (v7x) bandwidth sharing.
            tn = _round_up(-(-d2r // 2), 128)
        else:
            tn = d2r  # single full-width tile (full dim is exempt from the 128 rule)
    return tn


def lora_matmul(lora_b, lora_a, *, tn=None, out_dtype=None,
                compute_dtype=jnp.bfloat16):
    """Compute lora_B @ lora_A on the MXU, column-tiled along the d2 (lane) axis."""
    d1r, r = lora_b.shape
    r2, d2r = lora_a.shape
    assert r == r2, (lora_b.shape, lora_a.shape)

    if out_dtype is None:
        out_dtype = lora_b.dtype
    in_itemsize = max(jnp.dtype(lora_a.dtype).itemsize,
                      jnp.dtype(compute_dtype).itemsize)
    out_itemsize = jnp.dtype(out_dtype).itemsize
    if tn is None:
        tn = _pick_tn(d1r, r, d2r, in_itemsize, out_itemsize)

    grid = (pl.cdiv(d2r, tn),)  # ragged last tile handled by Pallas masking

    cost = pl.CostEstimate(
        flops=2 * d1r * r * d2r,
        transcendentals=0,
        bytes_accessed=(d1r * r * jnp.dtype(lora_b.dtype).itemsize
                        + r * d2r * jnp.dtype(lora_a.dtype).itemsize
                        + d1r * d2r * out_itemsize),
    )

    kernel = functools.partial(_lora_matmul_kernel, compute_dtype=compute_dtype)

    return pl.pallas_call(
        kernel,
        out_shape=jax.ShapeDtypeStruct((d1r, d2r), out_dtype),
        grid_spec=pltpu.PrefetchScalarGridSpec(
            num_scalar_prefetch=0,
            grid=grid,
            in_specs=[
                # lora_B: resident across the whole grid (constant index map).
                pl.BlockSpec((d1r, r), lambda j: (0, 0)),
                # lora_A: wide column tile.
                pl.BlockSpec((r, tn), lambda j: (0, j)),
            ],
            out_specs=pl.BlockSpec((d1r, tn), lambda j: (0, j)),
        ),
        compiler_params=pltpu.CompilerParams(
            dimension_semantics=("parallel",),
        ),
        cost_estimate=cost,
    )(lora_b, lora_a)


def lora_param_forward(lora_a, lora_b, ratio, *, tn=None):
    """Full LoraParam.forward: matmul (Pallas) + ratio re-fold + NCHW-ish expand.

    The reshape and [None, :, :, None] expand are metadata-only on a row-major
    (d1//ratio, d2*ratio) result, so they stay in plain JAX (no extra HBM pass).
    """
    out = lora_matmul(lora_b, lora_a, tn=tn)          # (d1//ratio, d2*ratio)
    if ratio is not None:
        d1r, d2r = out.shape
        out = out.reshape(d1r * ratio, d2r // ratio)  # (d1, d2)
    return out[None, :, :, None]                      # (1, d1, d2, 1)


def init_lora_params(key, d1, d2, r, ratio, dtype=jnp.float32):
    """Deterministic parameter init matching the module's shapes.

    Note: the torch module zero-inits lora_B (so out==0 at step 0).  Here we draw
    deterministic random values for both params so the example actually exercises
    the matmul path; lora_A uses the kaiming_uniform(a=sqrt(5)) bound 1/sqrt(fan_in).
    """
    if ratio is not None:
        assert d1 % ratio == 0
        d1_eff = d1 // ratio
        d2_eff = d2 * ratio
    else:
        d1_eff, d2_eff = d1, d2
    ka, kb = jax.random.split(key)
    bound_a = 1.0 / math.sqrt(d2_eff)
    lora_a = jax.random.uniform(
        ka, (r, d2_eff), dtype=dtype, minval=-bound_a, maxval=bound_a)
    lora_b = jax.random.uniform(
        kb, (d1_eff, r), dtype=dtype, minval=-0.1, maxval=0.1)
    return lora_a, lora_b


def _reference(lora_a, lora_b, ratio, compute_dtype=None):
    a, b = lora_a, lora_b
    if compute_dtype is not None:
        a = a.astype(compute_dtype)
        b = b.astype(compute_dtype)
    out = jnp.dot(b, a, preferred_element_type=jnp.float32).astype(lora_b.dtype)
    if ratio is not None:
        d1r, d2r = out.shape
        out = out.reshape(d1r * ratio, d2r // ratio)
    return out[None, :, :, None]


if __name__ == "__main__":
    key = jax.random.PRNGKey(0)

    # --- Test 1: small shapes consistent with the module: d1=32, d2=64, r=8, ratio=2
    d1, d2, r, ratio = 32, 64, 8, 2
    k1, k2 = jax.random.split(key)
    lora_a, lora_b = init_lora_params(k1, d1, d2, r, ratio)

    out = lora_param_forward(lora_a, lora_b, ratio)
    out = jax.block_until_ready(out)
    assert out.shape == (1, d1, d2, 1), out.shape

    ref_bf16 = _reference(lora_a, lora_b, ratio, compute_dtype=jnp.bfloat16)
    ref_f32 = _reference(lora_a, lora_b, ratio)
    assert jnp.allclose(out, ref_bf16, atol=1e-4, rtol=1e-4), "mismatch vs bf16 reference"
    assert jnp.allclose(out, ref_f32, atol=2e-3, rtol=2e-2), "mismatch vs f32 reference"

    # --- Test 2: exercise the ragged-last-tile path (d2r=384 with forced tn=256).
    d1b, d2b, rb, ratiob = 32, 192, 8, 2
    lora_a2, lora_b2 = init_lora_params(k2, d1b, d2b, rb, ratiob)
    out2 = lora_param_forward(lora_a2, lora_b2, ratiob, tn=256)
    out2 = jax.block_until_ready(out2)
    assert out2.shape == (1, d1b, d2b, 1), out2.shape
    ref2 = _reference(lora_a2, lora_b2, ratiob, compute_dtype=jnp.bfloat16)
    assert jnp.allclose(out2, ref2, atol=1e-4, rtol=1e-4), "ragged-tile mismatch"

    print("KERNEL_OK")
</pallas_src>

<mosaic_0001>
module attributes {stable_mosaic.version = 11 : i64} {
  func.func @_lora_matmul_kernel(%arg0: i32, %arg1: memref<16x8xf32, #tpu.memory_space<vmem>>, %arg2: memref<8x128xf32, #tpu.memory_space<vmem>>, %arg3: memref<16x128xf32, #tpu.memory_space<vmem>>) attributes {dimension_semantics = [#tpu.dimension_semantics<parallel>], iteration_bounds = array<i64: 1>, scalar_prefetch = 0 : i64, scratch_operands = 0 : i64, tpu.core_type = #tpu.core_type<tc>, window_params = [{pipeline_mode = #tpu.pipeline_mode<synchronous>, transform_indices = @transform_0, window_bounds = array<i64: 16, 8>}, {transform_indices = @transform_1, window_bounds = array<i64: 8, 128>}, {transform_indices = @transform_2, window_bounds = array<i64: 16, 128>}]} {
    %c0 = arith.constant 0 : index
    %c0_0 = arith.constant 0 : index
    %0 = vector.load %arg1[%c0, %c0_0] : memref<16x8xf32, #tpu.memory_space<vmem>>, vector<16x8xf32>
    %c0_1 = arith.constant 0 : index
    %c0_2 = arith.constant 0 : index
    %1 = vector.load %arg2[%c0_1, %c0_2] : memref<8x128xf32, #tpu.memory_space<vmem>>, vector<8x128xf32>
    %2 = arith.truncf %0 : vector<16x8xf32> to vector<16x8xbf16>
    %3 = arith.truncf %1 : vector<8x128xf32> to vector<8x128xbf16>
    %cst = arith.constant dense<0.000000e+00> : vector<16x128xf32>
    %4 = tpu.matmul %2, %3, %cst {dimension_numbers = #tpu.dot_dimension_numbers<[1], [0], [0], [1], [0, 0, 1, 1], [], []>} : vector<16x8xbf16>, vector<8x128xbf16>, vector<16x128xf32> -> vector<16x128xf32>
    %c0_3 = arith.constant 0 : index
    %c0_4 = arith.constant 0 : index
    %5 = vector.load %arg3[%c0_3, %c0_4] : memref<16x128xf32, #tpu.memory_space<vmem>>, vector<16x128xf32>
    tpu.vector_store %arg3[%c0_3, %c0_4], %4 {strides = array<i32>} : memref<16x128xf32, #tpu.memory_space<vmem>>, vector<16x128xf32>,
    return
  }
  func.func @transform_0(%arg0: i32) -> (i32, i32) {
    %c0_i32 = arith.constant 0 : i32
    %c0_i32_0 = arith.constant 0 : i32
    %c0_i32_1 = arith.constant 0 : i32
    return %c0_i32, %c0_i32_0 : i32, i32
  }
  func.func @transform_1(%arg0: i32) -> (i32, i32) {
    %c0_i32 = arith.constant 0 : i32
    %c0_i32_0 = arith.constant 0 : i32
    return %c0_i32, %arg0 : i32, i32
  }
  func.func @transform_2(%arg0: i32) -> (i32, i32) {
    %c0_i32 = arith.constant 0 : i32
    %c0_i32_0 = arith.constant 0 : i32
    return %c0_i32, %arg0 : i32, i32
  }
}

</mosaic_0001>

<llo_original>
// kernel: tpu_custom_call.1
$region0: #{tpu_custom_call.1}
  #allocation0 [shape = 'u32[]', space=smem, size = 0x4, offset = 0x4, fixed_abs, tag = 'smem constant byte address 0x4 - core index']
  #allocation1 [shape = 'u32[144,128]{1,0:T(1,128)}', space=vmem, size = 0x12000, scoped, tag = 'internal scratch']
  %s0 = inlined_call_operand.vmem [shape: f32[16,8], index: 0, kind: input, shape index: {}]
  %s1 = inlined_call_operand.vmem [shape: f32[8,128], index: 1, kind: input, shape index: {}]
  %s2 = inlined_call_operand.hbm [shape: f32[16,128], index: 2, kind: output, shape index: {}]
  %s3 = sld [smem:[#allocation0]]
  $region18: #{tpu_custom_call.1} parent=0
    _
  %s5 = ssub.s32 1, %s3
  %s6 = scalar_select 0, %s5, %s3
  $region1: #{tpu_custom_call.1} parent=0
    #allocation2 [shape = 'u8[8192]{0}', space=vmem, size = 0x2000, scoped, tag = 'output window, operand 0, single buffered']
    #allocation3 [shape = 's32[1]{0}', space=sflag, size = 0x4, scoped, tag = 'scoped memory for tpu_custom_call.1']
    %7 = vsyncpa [#allocation3], 0
    // Predicated region
    $region2: #{tpu_custom_call.1} parent=1 // pred_check
      _
    $region3: #{tpu_custom_call.1} parent=1 // pred_check_branch
      %9 = sbr.rel (0) target = $region5
    $region4: #{tpu_custom_call.1} parent=1 // pred_region
      _
    $region5: #{tpu_custom_call.1} parent=1 // pred_fallthru
      _
    // Predicated region
    $region6: #{tpu_custom_call.1} parent=1 // pred_check
      _
    $region7: #{tpu_custom_call.1} parent=1 // pred_check_branch
      %11 = sbr.rel (0) target = $region9
    $region8: #{tpu_custom_call.1} parent=1 // pred_region
      _
    $region9: #{tpu_custom_call.1} parent=1 // pred_fallthru
      _
    %v13 = vld [vmem:[%s0] sm:$0xff]
    %v14 = vld [vmem:[%s0 + $0x8] sm:$0xff]
    %v15 = vld [vmem:[%s1] sm:$0xff]
    %v16 = vpack.c.bf16 %v14, %v13
    %v17 = vpack.c.bf16 %v15, %v15
    %vm18 = vcmask 64512
    %v20 = vsel %vm18, %v16, 0
    %vm22 = vcmask 1043456
    %v24 = vsel %vm22, %v17, 0
    %26 = vmatprep.subr.bf16.mxu0 0
    %27 = vmatpush1.bf16.msra.mxu0 %v24
    %28 = vmatprep.subr.bf16.mxu0 0
    %29 = vmatpush1.bf16.msra.mxu0 0
    %30 = vmatprep.subr.bf16.mxu0 0
    %31 = vmatpush1.bf16.msra.mxu0 0
    %32 = vmatprep.subr.bf16.mxu0 0
    %33 = vmatpush1.bf16.msra.mxu0 0
    %34 = vmatprep.subr.bf16.mxu0 0
    %35 = vmatpush1.bf16.msra.mxu0 0
    %36 = vmatprep.subr.bf16.mxu0 0
    %37 = vmatpush1.bf16.msra.mxu0 0
    %38 = vmatprep.subr.bf16.mxu0 0
    %39 = vmatpush1.bf16.msra.mxu0 0
    %40 = vmatprep.subr.bf16.mxu0 0
    %41 = vmatpush1.bf16.msra.mxu0 0
    %42 = vmatprep.subr.bf16.mxu0 0
    %43 = vmatpush1.bf16.msra.mxu0 0
    %44 = vmatprep.subr.bf16.mxu0 0
    %45 = vmatpush1.bf16.msra.mxu0 0
    %46 = vmatprep.subr.bf16.mxu0 0
    %47 = vmatpush1.bf16.msra.mxu0 0
    %48 = vmatprep.subr.bf16.mxu0 0
    %49 = vmatpush1.bf16.msra.mxu0 0
    %50 = vmatprep.subr.bf16.mxu0 0
    %51 = vmatpush1.bf16.msra.mxu0 0
    %52 = vmatprep.subr.bf16.mxu0 0
    %53 = vmatpush1.bf16.msra.mxu0 0
    %54 = vmatprep.subr.bf16.mxu0 0
    %55 = vmatpush1.bf16.msra.mxu0 0
    %56 = vmatprep.subr.bf16.mxu0 0
    %57 = vmatpush1.bf16.msra.mxu0 0
    %58 = vmatprep.mubr.bf16.mxu0 0
    %59 = vmatmul.mubr.bf16.gmra.mrb[0].mxu0 %v20
    %v60 = vpop.f32.mrb[0].mxu0
    %v61 = vadd.f32 0.0, %v60
    %v62 = vpop.f32.mrb[0].mxu0
    %v63 = vpop.f32.mrb[0].mxu0
    %v64 = vadd.f32 0.0, %v63
    %v65 = vpop.f32.mrb[0].mxu0
    %66 = vdwg.mxu0
    %67 = vst [vmem:[#allocation2] sm:$0xff] %v61
    %68 = vst [vmem:[#allocation2 + $0x8] sm:$0xff] %v64
    // Predicated region
    $region10: #{tpu_custom_call.1} parent=1 // pred_check
      _
    $region11: #{tpu_custom_call.1} parent=1 // pred_check_branch
      %70 = sbr.rel (0) target = $region13
    $region12: #{tpu_custom_call.1} parent=1 // pred_region
      %s72 = ssub.s32 256, 256
      %73 = vsyncadd [#allocation3], %s72
      %s74 = sshll.u32 [#allocation2], 4
      %s75 = int_to_ptr.vmem [resolvable:$true] %s74
      %80 = dma.vmem_to_hbm [thread:$0]  %s75, 256, %s2, [#allocation3], 128, 128, 8
    $region13: #{tpu_custom_call.1} parent=1 // pred_fallthru
      _
    // Predicated region
    $region14: #{tpu_custom_call.1} parent=1 // pred_check
      _
    $region15: #{tpu_custom_call.1} parent=1 // pred_check_branch
      %82 = sbr.rel (0) target = $region17
    $region16: #{tpu_custom_call.1} parent=1 // pred_region
      %83 = dma.done [#allocation3], 256
    $region17: #{tpu_custom_call.1} parent=1 // pred_fallthru
      _
    %84 = vsyncpa [#allocation3], 1

</llo_original>
